<compile_context>
chip_gen: v7x
topology: tpu7x:2x2x1
jax: 0.10.0
libtpu: 0.0.40
codegen_flags: <defaults>
</compile_context>

<pallas_src>
import functools
import math

import jax
import jax.numpy as jnp
from jax.experimental import pallas as pl
from jax.experimental.pallas import tpu as pltpu


# ----------------------------- generation-aware config ---------------------

@functools.lru_cache(maxsize=None)
def _vmem_limit():
    """Scoped-VMEM limit for this generation (v7x: 64 MiB phys, v5e/v6e: 128 MiB)."""
    cap = 64 * 1024 * 1024
    try:
        cap = int(pltpu.get_tpu_info().vmem_capacity_bytes)
    except Exception:
        pass
    return min(int(cap * 3 // 4), 112 * 1024 * 1024)


@functools.lru_cache(maxsize=None)
def _tile_targets():
    if _vmem_limit() >= 80 * 1024 * 1024:      # v5e / v6e (128 MiB VMEM)
        return 512, 1024, 1024
    return 256, 512, 512                        # v7x (64 MiB VMEM)


def _cparams(dims):
    return pltpu.CompilerParams(dimension_semantics=dims,
                                vmem_limit_bytes=_vmem_limit())


def _pick_tile(dim, target, align):
    """Largest tile <= target that is a multiple of `align` and divides `dim`;
    falls back to the full dimension (block == full array dim is always legal)."""
    # TODO(synk): pad ragged dims (dim % align != 0) instead of full-dim fallback;
    # all dims in this model (and BERT-base) are already 16/128-aligned.
    if dim <= target or dim % align != 0:
        return dim
    t = (target // align) * align
    while t >= align:
        if dim % t == 0:
            return t
        t -= align
    return dim


# ----------------------------- matmul kernels ------------------------------

def _linear_kernel(x_ref, w_ref, b_ref, o_ref, acc_ref, *, activation):
    k = pl.program_id(2)

    @pl.when(k == 0)
    def _():
        acc_ref[...] = jnp.zeros_like(acc_ref)

    acc_ref[...] += jnp.dot(x_ref[...], w_ref[...],
                            preferred_element_type=jnp.float32)

    @pl.when(k == pl.num_programs(2) - 1)
    def _():
        y = acc_ref[...] + b_ref[...].astype(jnp.float32)
        if activation == "gelu":
            # TODO(synk): exact erf-based GELU (HF BERT default); tanh approximation.
            c = math.sqrt(2.0 / math.pi)
            y = 0.5 * y * (1.0 + jnp.tanh(c * (y + 0.044715 * y * y * y)))
        o_ref[...] = y.astype(o_ref.dtype)


def linear(x, w, b, activation=None, out_dtype=jnp.bfloat16,
           tm=None, tn=None, tk=None):
    M, K = x.shape
    N = w.shape[1]
    dm, dn, dk = _tile_targets()
    tm = _pick_tile(M, tm or dm, 16)
    tn = _pick_tile(N, tn or dn, 128)
    tk = _pick_tile(K, tk or dk, 128)
    # TODO(synk): pipeline_mode=pl.Buffered(3) on the weight spec for v5e.
    return pl.pallas_call(
        functools.partial(_linear_kernel, activation=activation),
        out_shape=jax.ShapeDtypeStruct((M, N), out_dtype),
        grid=(M // tm, N // tn, K // tk),
        in_specs=[
            pl.BlockSpec((tm, tk), lambda i, j, k: (i, k)),
            pl.BlockSpec((tk, tn), lambda i, j, k: (k, j)),
            pl.BlockSpec((1, tn), lambda i, j, k: (0, j)),
        ],
        out_specs=pl.BlockSpec((tm, tn), lambda i, j, k: (i, j)),
        scratch_shapes=[pltpu.VMEM((tm, tn), jnp.float32)],
        compiler_params=_cparams(("parallel", "parallel", "arbitrary")),
    )(x, w, b.reshape(1, N))


def linear_qkv(x, w3, b3, out_dtype=jnp.bfloat16, tm=None, tn=None, tk=None):
    """Fused QKV projection: x(M,H) @ w3(3,H,H) + b3(3,H) -> (3, M, H).

    Emitting q/k/v as separate planes directly from the out BlockSpec means the
    attention kernel can read them with plane index maps — no JAX-side column
    slices of a (M, 3H) tensor (3 extra HBM read+write passes per layer)."""
    M, K = x.shape
    _, _, H = w3.shape
    dm, dn, dk = _tile_targets()
    tm = _pick_tile(M, tm or dm, 16)
    tn = _pick_tile(H, tn or dn, 128)
    tk = _pick_tile(K, tk or dk, 128)
    nH = H // tn
    return pl.pallas_call(
        functools.partial(_linear_kernel, activation=None),
        out_shape=jax.ShapeDtypeStruct((3, M, H), out_dtype),
        grid=(M // tm, 3 * nH, K // tk),
        in_specs=[
            pl.BlockSpec((tm, tk), lambda i, j, k: (i, k)),
            pl.BlockSpec((None, tk, tn), lambda i, j, k: (j // nH, k, j % nH)),
            pl.BlockSpec((None, 1, tn), lambda i, j, k: (j // nH, 0, j % nH)),
        ],
        out_specs=pl.BlockSpec((None, tm, tn),
                               lambda i, j, k: (j // nH, i, j % nH)),
        scratch_shapes=[pltpu.VMEM((tm, tn), jnp.float32)],
        compiler_params=_cparams(("parallel", "parallel", "arbitrary")),
    )(x, w3, b3.reshape(3, 1, H))


def _linear_add_ln_kernel(x_ref, w_ref, b_ref, res_ref, g_ref, bt_ref,
                          o_ref, acc_ref, *, eps):
    k = pl.program_id(1)

    @pl.when(k == 0)
    def _():
        acc_ref[...] = jnp.zeros_like(acc_ref)

    acc_ref[...] += jnp.dot(x_ref[...], w_ref[...],
                            preferred_element_type=jnp.float32)

    @pl.when(k == pl.num_programs(1) - 1)
    def _():
        y = (acc_ref[...] + b_ref[...].astype(jnp.float32)
             + res_ref[...].astype(jnp.float32))
        mean = jnp.mean(y, axis=-1, keepdims=True)
        var = jnp.mean((y - mean) * (y - mean), axis=-1, keepdims=True)
        y = (y - mean) * jax.lax.rsqrt(var + eps)
        y = y * g_ref[...].astype(jnp.float32) + bt_ref[...].astype(jnp.float32)
        o_ref[...] = y.astype(o_ref.dtype)


def linear_add_layernorm(x, w, b, residual, gamma, beta, eps=1e-12,
                         out_dtype=jnp.bfloat16, tm=None, tk=None):
    """Fused: (x @ w + b + residual) -> LayerNorm. N kept whole (LN needs it)."""
    M, K = x.shape
    N = w.shape[1]
    dm, _, dk = _tile_targets()
    tm = _pick_tile(M, tm or dm, 16)
    tk = _pick_tile(K, tk or dk, 128)
    return pl.pallas_call(
        functools.partial(_linear_add_ln_kernel, eps=eps),
        out_shape=jax.ShapeDtypeStruct((M, N), out_dtype),
        grid=(M // tm, K // tk),
        in_specs=[
            pl.BlockSpec((tm, tk), lambda i, k: (i, k)),
            pl.BlockSpec((tk, N), lambda i, k: (k, 0)),
            pl.BlockSpec((1, N), lambda i, k: (0, 0)),
            pl.BlockSpec((tm, N), lambda i, k: (i, 0)),
            pl.BlockSpec((1, N), lambda i, k: (0, 0)),
            pl.BlockSpec((1, N), lambda i, k: (0, 0)),
        ],
        out_specs=pl.BlockSpec((tm, N), lambda i, k: (i, 0)),
        scratch_shapes=[pltpu.VMEM((tm, N), jnp.float32)],
        compiler_params=_cparams(("parallel", "arbitrary")),
    )(x, w, b.reshape(1, N), residual, gamma.reshape(1, N), beta.reshape(1, N))


# ----------------------------- layernorm ------------------------------------

def _layernorm_kernel(x_ref, g_ref, b_ref, o_ref, *, eps):
    x = x_ref[...].astype(jnp.float32)
    mean = jnp.mean(x, axis=-1, keepdims=True)
    var = jnp.mean((x - mean) * (x - mean), axis=-1, keepdims=True)
    y = (x - mean) * jax.lax.rsqrt(var + eps)
    o_ref[...] = (y * g_ref[...] + b_ref[...]).astype(o_ref.dtype)


def layernorm(x, gamma, beta, eps=1e-12, out_dtype=jnp.bfloat16, tm=512):
    M, H = x.shape
    tm = _pick_tile(M, tm, 16)
    return pl.pallas_call(
        functools.partial(_layernorm_kernel, eps=eps),
        out_shape=jax.ShapeDtypeStruct((M, H), out_dtype),
        grid=(M // tm,),
        in_specs=[
            pl.BlockSpec((tm, H), lambda i: (i, 0)),
            pl.BlockSpec((1, H), lambda i: (0, 0)),
            pl.BlockSpec((1, H), lambda i: (0, 0)),
        ],
        out_specs=pl.BlockSpec((tm, H), lambda i: (i, 0)),
        compiler_params=_cparams(("parallel",)),
    )(x, gamma.reshape(1, H), beta.reshape(1, H))


# ----------------------------- attention -------------------------------------

def _attention_kernel(q_ref, k_ref, v_ref, o_ref, *, heads_per_group, causal):
    S, gw = q_ref.shape
    dh = gw // heads_per_group
    scale = 1.0 / math.sqrt(dh)

    if causal:
        row = jax.lax.broadcasted_iota(jnp.int32, (S, S), 0)
        col = jax.lax.broadcasted_iota(jnp.int32, (S, S), 1)
        mask_bias = jnp.where(row >= col, 0.0, -1e9).astype(jnp.float32)

    outs = []
    for h in range(heads_per_group):            # small static loop (2 at BERT sizes)
        qh = q_ref[:, h * dh:(h + 1) * dh]
        kh = k_ref[:, h * dh:(h + 1) * dh]
        vh = v_ref[:, h * dh:(h + 1) * dh]
        s = jax.lax.dot_general(qh, kh, (((1,), (1,)), ((), ())),
                                preferred_element_type=jnp.float32) * scale
        if causal:
            s = s + mask_bias
        m = jnp.max(s, axis=-1, keepdims=True)
        p = jnp.exp(s - m)                       # unnormalized probabilities
        r = pl.reciprocal(jnp.sum(p, axis=-1, keepdims=True), approx=True)
        # normalize the (S, dh) PV result, not the (S, S) probability matrix
        oh = jnp.dot(p.astype(vh.dtype), vh,
                     preferred_element_type=jnp.float32) * r
        outs.append(oh)
    grp = outs[0] if len(outs) == 1 else jnp.concatenate(outs, axis=-1)
    o_ref[...] = grp.astype(o_ref.dtype)         # single lane-aligned group store


def attention(qkv, num_heads, causal):
    """qkv: (3, B, S, H) bf16 planes straight from linear_qkv. Grid over
    (batch, head-group); each group is a contiguous, 128-lane-aligned column
    window of H when possible (falls back to whole-H windows at tiny H)."""
    # TODO(synk): flash-style KV tiling (online softmax) for very long S.
    _, B, S, H = qkv.shape
    dh = H // num_heads
    if dh % 128 == 0:
        hpg = 1
    elif (128 % dh == 0) and (num_heads % (128 // dh) == 0):
        hpg = 128 // dh
    else:
        hpg = num_heads
    gw = hpg * dh
    if gw % 128 != 0 and gw != H:
        hpg, gw = num_heads, H                    # whole-H fallback (always legal)
    G = num_heads // hpg

    def spec(p):
        return pl.BlockSpec((None, None, S, gw), lambda b, g, p=p: (p, b, 0, g))

    return pl.pallas_call(
        functools.partial(_attention_kernel, heads_per_group=hpg, causal=causal),
        out_shape=jax.ShapeDtypeStruct((B, S, H), jnp.bfloat16),
        grid=(B, G),
        in_specs=[spec(0), spec(1), spec(2)],
        out_specs=pl.BlockSpec((None, S, gw), lambda b, g: (b, 0, g)),
        compiler_params=_cparams(("parallel", "parallel")),
    )(qkv, qkv, qkv)


# ----------------------------- fused classifier heads ------------------------

def _head_tiles(M, K, V):
    """Tile sizes for the classifier head (V kept whole), bounded so the f32
    accumulator / output / bf16 weight blocks fit the per-generation VMEM cap."""
    dm, _, dk = _tile_targets()
    lim = _vmem_limit()
    tm_cap = max(16, ((lim // 2) // (V * 12)) // 16 * 16)     # acc + 2x out (f32)
    tk_cap = max(128, ((lim // 3) // (V * 4)) // 128 * 128)   # 2x (tk, V) bf16
    tm = _pick_tile(M, min(dm, tm_cap), 16)
    tk = _pick_tile(K, min(dk, tk_cap), 128)
    return tm, tk


def _linear_softmax_kernel(x_ref, w_ref, b_ref, o_ref, acc_ref):
    k = pl.program_id(1)

    @pl.when(k == 0)
    def _():
        acc_ref[...] = jnp.zeros_like(acc_ref)

    acc_ref[...] += jnp.dot(x_ref[...], w_ref[...],
                            preferred_element_type=jnp.float32)

    @pl.when(k == pl.num_programs(1) - 1)
    def _():
        logits = acc_ref[...] + b_ref[...].astype(jnp.float32)
        m = jnp.max(logits, axis=-1, keepdims=True)
        e = jnp.exp(logits - m)
        # exact division: probabilities are user-visible output
        o_ref[...] = (e / jnp.sum(e, axis=-1, keepdims=True)).astype(o_ref.dtype)


def classifier_softmax(x, w, b):
    """Final Linear + softmax fused: logits never touch HBM."""
    M, K = x.shape
    V = w.shape[1]
    tm, tk = _head_tiles(M, K, V)
    return pl.pallas_call(
        _linear_softmax_kernel,
        out_shape=jax.ShapeDtypeStruct((M, V), jnp.float32),
        grid=(M // tm, K // tk),
        in_specs=[
            pl.BlockSpec((tm, tk), lambda i, k: (i, k)),
            pl.BlockSpec((tk, V), lambda i, k: (k, 0)),
            pl.BlockSpec((1, V), lambda i, k: (0, 0)),
        ],
        out_specs=pl.BlockSpec((tm, V), lambda i, k: (i, 0)),
        scratch_shapes=[pltpu.VMEM((tm, V), jnp.float32)],
        compiler_params=_cparams(("parallel", "arbitrary")),
    )(x, w, b.reshape(1, V))


def _linear_ce_kernel(x_ref, w_ref, b_ref, lab_ref, loss_ref, acc_ref, *, n_total):
    k = pl.program_id(1)

    @pl.when(k == 0)
    def _():
        acc_ref[...] = jnp.zeros_like(acc_ref)

    acc_ref[...] += jnp.dot(x_ref[...], w_ref[...],
                            preferred_element_type=jnp.float32)

    @pl.when(k == pl.num_programs(1) - 1)
    def _():
        logits = acc_ref[...] + b_ref[...].astype(jnp.float32)   # (tm, V) f32
        tm, V = logits.shape
        m = jnp.max(logits, axis=-1, keepdims=True)
        lse = jnp.log(jnp.sum(jnp.exp(logits - m), axis=-1, keepdims=True)) + m
        col = jax.lax.broadcasted_iota(jnp.int32, (tm, V), 1)
        lab = lab_ref[...]                                        # (tm, 1) int32
        picked = jnp.sum(jnp.where(col == lab, logits, 0.0),
                         axis=-1, keepdims=True)
        partial = jnp.sum(lse - picked, axis=0, keepdims=True) / n_total   # (1,1)
        loss_ref[...] = jnp.broadcast_to(partial, loss_ref.shape)


def classifier_ce(x, w, b, labels):
    """Final Linear + mean cross-entropy fused; per-M-tile partial losses let the
    M axis stay 'parallel' (both v7x TensorCores participate); summed in JAX."""
    # TODO(synk): no ignore_index handling (the reference module does not use one).
    M, K = x.shape
    V = w.shape[1]
    tm, tk = _head_tiles(M, K, V)
    nm = M // tm
    out = pl.pallas_call(
        functools.partial(_linear_ce_kernel, n_total=float(M)),
        out_shape=jax.ShapeDtypeStruct((nm, 1, 128), jnp.float32),
        grid=(nm, K // tk),
        in_specs=[
            pl.BlockSpec((tm, tk), lambda i, k: (i, k)),
            pl.BlockSpec((tk, V), lambda i, k: (k, 0)),
            pl.BlockSpec((1, V), lambda i, k: (0, 0)),
            pl.BlockSpec((tm, 1), lambda i, k: (i, 0)),
        ],
        out_specs=pl.BlockSpec((None, 1, 128), lambda i, k: (i, 0, 0)),
        scratch_shapes=[pltpu.VMEM((tm, V), jnp.float32)],
        compiler_params=_cparams(("parallel", "arbitrary")),
    )(x, w, b.reshape(1, V), labels.reshape(M, 1).astype(jnp.int32))
    return jnp.sum(out[:, 0, 0])


# ----------------------------- model (glue) ----------------------------------

def init_params(key, vocab, hidden, num_heads, n_layers, intermediate, max_pos):
    keys = iter(jax.random.split(key, 8 + 4 * n_layers))

    def nrm(shape, dtype=jnp.float32):
        return (0.02 * jax.random.normal(next(keys), shape, jnp.float32)).astype(dtype)

    ones = lambda *s: jnp.ones(s, jnp.float32)
    zeros = lambda *s: jnp.zeros(s, jnp.float32)

    params = {
        "num_heads": num_heads,
        "word_emb": nrm((vocab, hidden)),
        "pos_emb": nrm((max_pos, hidden)),
        "type_emb": nrm((2, hidden)),
        "emb_ln_g": ones(hidden), "emb_ln_b": zeros(hidden),
        "cls_w": nrm((hidden, vocab), jnp.bfloat16), "cls_b": zeros(vocab),
        "layers": [],
    }
    for _ in range(n_layers):
        params["layers"].append({
            # q/k/v projection weights stacked as planes: (3, H, H) / (3, H)
            "wqkv": nrm((3, hidden, hidden), jnp.bfloat16), "bqkv": zeros(3, hidden),
            "wo": nrm((hidden, hidden), jnp.bfloat16), "bo": zeros(hidden),
            "attn_ln_g": ones(hidden), "attn_ln_b": zeros(hidden),
            "w1": nrm((hidden, intermediate), jnp.bfloat16), "b1": zeros(intermediate),
            "w2": nrm((intermediate, hidden), jnp.bfloat16), "b2": zeros(hidden),
            "ffn_ln_g": ones(hidden), "ffn_ln_b": zeros(hidden),
        })
    return params


def sft_forward(params, x_ids, y=None):
    """y given  -> scalar mean cross-entropy loss (causal tril attention mask)
       y absent -> per-token softmax distribution (B, S, V), no attention mask."""
    B, S = x_ids.shape
    H = params["word_emb"].shape[1]
    nh = params["num_heads"]
    causal = y is not None

    # Embedding lookups stay in JAX glue.
    # TODO(synk): embedding gather has no clean dense-Pallas equivalent at this scale.
    emb = (params["word_emb"][x_ids]
           + params["pos_emb"][:S][None, :, :]
           + params["type_emb"][0][None, None, :])
    h = layernorm(emb.reshape(B * S, H), params["emb_ln_g"], params["emb_ln_b"])

    for lyr in params["layers"]:
        qkv = linear_qkv(h, lyr["wqkv"], lyr["bqkv"])              # (3, B*S, H) bf16
        ctx = attention(qkv.reshape(3, B, S, H), nh, causal).reshape(B * S, H)
        h = linear_add_layernorm(ctx, lyr["wo"], lyr["bo"], h,
                                 lyr["attn_ln_g"], lyr["attn_ln_b"])
        ffn = linear(h, lyr["w1"], lyr["b1"], activation="gelu")
        h = linear_add_layernorm(ffn, lyr["w2"], lyr["b2"], h,
                                 lyr["ffn_ln_g"], lyr["ffn_ln_b"])

    if y is not None:
        return classifier_ce(h, params["cls_w"], params["cls_b"], y.reshape(B * S))
    return classifier_softmax(h, params["cls_w"], params["cls_b"]).reshape(B, S, -1)


if __name__ == "__main__":
    B, S, H, V = 2, 8, 32, 32
    NUM_HEADS, N_LAYERS, INTERMEDIATE, MAX_POS = 4, 2, 64, 64

    key = jax.random.PRNGKey(0)
    pkey, xkey, ykey = jax.random.split(key, 3)
    params = init_params(pkey, V, H, NUM_HEADS, N_LAYERS, INTERMEDIATE, MAX_POS)

    x = jax.random.randint(xkey, (B, S), 0, V, dtype=jnp.int32)
    y = jax.random.randint(ykey, (B, S), 0, V, dtype=jnp.int32)

    loss = sft_forward(params, x, y)        # training branch: scalar CE loss
    probs = sft_forward(params, x, None)    # inference branch: (B, S, V) softmax

    jax.block_until_ready((loss, probs))
    assert loss.shape == () and probs.shape == (B, S, V)
    print("KERNEL_OK")
</pallas_src>

<mosaic_0001>
module attributes {stable_mosaic.version = 11 : i64} {
  func.func @_layernorm_kernel(%arg0: i32, %arg1: memref<16x32xf32, #tpu.memory_space<vmem>>, %arg2: memref<1x32xf32, #tpu.memory_space<vmem>>, %arg3: memref<1x32xf32, #tpu.memory_space<vmem>>, %arg4: memref<16x32xbf16, #tpu.memory_space<vmem>>) attributes {dimension_semantics = [#tpu.dimension_semantics<parallel>], iteration_bounds = array<i64: 1>, scalar_prefetch = 0 : i64, scratch_operands = 0 : i64, tpu.core_type = #tpu.core_type<tc>, window_params = [{transform_indices = @transform_0, window_bounds = array<i64: 16, 32>}, {pipeline_mode = #tpu.pipeline_mode<synchronous>, transform_indices = @transform_1, window_bounds = array<i64: 1, 32>}, {pipeline_mode = #tpu.pipeline_mode<synchronous>, transform_indices = @transform_2, window_bounds = array<i64: 1, 32>}, {transform_indices = @transform_3, window_bounds = array<i64: 16, 32>}]} {
    %c0 = arith.constant 0 : index
    %c0_0 = arith.constant 0 : index
    %0 = vector.load %arg1[%c0, %c0_0] : memref<16x32xf32, #tpu.memory_space<vmem>>, vector<16x32xf32>
    %cst = arith.constant dense<0.000000e+00> : vector<16xf32>
    %1 = vector.multi_reduction <add>, %0, %cst [1] : vector<16x32xf32> to vector<16xf32>
    %2 = vector.shape_cast %1 : vector<16xf32> to vector<16x1xf32>
    %cst_1 = arith.constant 3.200000e+01 : f32
    %3 = vector.broadcast %cst_1 : f32 to vector<16x1xf32>
    %4 = arith.divf %2, %3 : vector<16x1xf32>
    %5 = vector.broadcast %4 : vector<16x1xf32> to vector<16x32xf32>
    %6 = arith.subf %0, %5 : vector<16x32xf32>
    %7 = vector.broadcast %4 : vector<16x1xf32> to vector<16x32xf32>
    %8 = arith.subf %0, %7 : vector<16x32xf32>
    %9 = arith.mulf %6, %8 : vector<16x32xf32>
    %cst_2 = arith.constant dense<0.000000e+00> : vector<16xf32>
    %10 = vector.multi_reduction <add>, %9, %cst_2 [1] : vector<16x32xf32> to vector<16xf32>
    %11 = vector.shape_cast %10 : vector<16xf32> to vector<16x1xf32>
    %cst_3 = arith.constant 3.200000e+01 : f32
    %12 = vector.broadcast %cst_3 : f32 to vector<16x1xf32>
    %13 = arith.divf %11, %12 : vector<16x1xf32>
    %14 = vector.broadcast %4 : vector<16x1xf32> to vector<16x32xf32>
    %15 = arith.subf %0, %14 : vector<16x32xf32>
    %cst_4 = arith.constant 9.99999996E-13 : f32
    %16 = vector.broadcast %cst_4 : f32 to vector<16x1xf32>
    %17 = arith.addf %13, %16 : vector<16x1xf32>
    %18 = math.rsqrt %17 : vector<16x1xf32>
    %19 = vector.broadcast %18 : vector<16x1xf32> to vector<16x32xf32>
    %20 = arith.mulf %15, %19 : vector<16x32xf32>
    %c0_5 = arith.constant 0 : index
    %c0_6 = arith.constant 0 : index
    %21 = vector.load %arg2[%c0_5, %c0_6] : memref<1x32xf32, #tpu.memory_space<vmem>>, vector<1x32xf32>
    %22 = vector.broadcast %21 : vector<1x32xf32> to vector<16x32xf32>
    %23 = arith.mulf %20, %22 : vector<16x32xf32>
    %c0_7 = arith.constant 0 : index
    %c0_8 = arith.constant 0 : index
    %24 = vector.load %arg3[%c0_7, %c0_8] : memref<1x32xf32, #tpu.memory_space<vmem>>, vector<1x32xf32>
    %25 = vector.broadcast %24 : vector<1x32xf32> to vector<16x32xf32>
    %26 = arith.addf %23, %25 : vector<16x32xf32>
    %27 = arith.truncf %26 : vector<16x32xf32> to vector<16x32xbf16>
    %c0_9 = arith.constant 0 : index
    %c0_10 = arith.constant 0 : index
    %28 = vector.load %arg4[%c0_9, %c0_10] : memref<16x32xbf16, #tpu.memory_space<vmem>>, vector<16x32xbf16>
    tpu.vector_store %arg4[%c0_9, %c0_10], %27 {strides = array<i32>} : memref<16x32xbf16, #tpu.memory_space<vmem>>, vector<16x32xbf16>,
    return
  }
  func.func @transform_0(%arg0: i32) -> (i32, i32) {
    %c0_i32 = arith.constant 0 : i32
    %c0_i32_0 = arith.constant 0 : i32
    return %arg0, %c0_i32 : i32, i32
  }
  func.func @transform_1(%arg0: i32) -> (i32, i32) {
    %c0_i32 = arith.constant 0 : i32
    %c0_i32_0 = arith.constant 0 : i32
    %c0_i32_1 = arith.constant 0 : i32
    return %c0_i32, %c0_i32_0 : i32, i32
  }
  func.func @transform_2(%arg0: i32) -> (i32, i32) {
    %c0_i32 = arith.constant 0 : i32
    %c0_i32_0 = arith.constant 0 : i32
    %c0_i32_1 = arith.constant 0 : i32
    return %c0_i32, %c0_i32_0 : i32, i32
  }
  func.func @transform_3(%arg0: i32) -> (i32, i32) {
    %c0_i32 = arith.constant 0 : i32
    %c0_i32_0 = arith.constant 0 : i32
    return %arg0, %c0_i32 : i32, i32
  }
}

</mosaic_0001>

<llo_original>
// kernel: tpu_custom_call.1
$region0: #{tpu_custom_call.1}
  #allocation0 [shape = 'u32[]', space=smem, size = 0x4, offset = 0x4, fixed_abs, tag = 'smem constant byte address 0x4 - core index']
  #allocation1 [shape = 'u32[144,128]{1,0:T(1,128)}', space=vmem, size = 0x12000, scoped, tag = 'internal scratch']
  %s0 = inlined_call_operand.hbm [shape: f32[16,32], index: 0, kind: input, shape index: {}]
  %s1 = inlined_call_operand.vmem [shape: f32[1,32], index: 1, kind: input, shape index: {}]
  %s2 = inlined_call_operand.vmem [shape: f32[1,32], index: 2, kind: input, shape index: {}]
  %s3 = inlined_call_operand.hbm [shape: bf16[16,32], index: 3, kind: output, shape index: {}]
  %s4 = sld [smem:[#allocation0]]
  $region26: #{tpu_custom_call.1} parent=0
    _
  %s6 = ssub.s32 1, %s4
  %s7 = scalar_select 0, %s6, %s4
  $region1: #{tpu_custom_call.1} parent=0
    #allocation2 [shape = 'u8[8192]{0}', space=vmem, size = 0x2000, scoped, tag = 'input window, operand 0, single buffered']
    #allocation3 [shape = 's32[1]{0}', space=sflag, size = 0x4, scoped, tag = 'scoped memory for tpu_custom_call.1']
    #allocation4 [shape = 's32[1]{0}', space=sflag, size = 0x4, scoped, tag = 'scoped memory for tpu_custom_call.1']
    #allocation5 [shape = 'u8[4096]{0}', space=vmem, size = 0x1000, scoped, tag = 'output window, operand 0, single buffered']
    %8 = vsyncpa [#allocation3], 0
    %9 = vsyncpa [#allocation4], 0
    // Predicated region
    $region2: #{tpu_custom_call.1} parent=1 // pred_check
      _
    $region3: #{tpu_custom_call.1} parent=1 // pred_check_branch
      %11 = sbr.rel (0) target = $region5
    $region4: #{tpu_custom_call.1} parent=1 // pred_region
      %s13 = ssub.s32 256, 256
      %14 = vsyncadd [#allocation3], %s13
      %s15 = sshll.u32 [#allocation2], 4
      %s16 = int_to_ptr.vmem [resolvable:$true] %s15
      %21 = dma.hbm_to_vmem [thread:$0]  %s0, 256, %s16, [#allocation3], 128, 128, 8
    $region5: #{tpu_custom_call.1} parent=1 // pred_fallthru
      _
    // Predicated region
    $region6: #{tpu_custom_call.1} parent=1 // pred_check
      _
    $region7: #{tpu_custom_call.1} parent=1 // pred_check_branch
      %23 = sbr.rel (0) target = $region9
    $region8: #{tpu_custom_call.1} parent=1 // pred_region
      _
    $region9: #{tpu_custom_call.1} parent=1 // pred_fallthru
      _
    // Predicated region
    $region10: #{tpu_custom_call.1} parent=1 // pred_check
      _
    $region11: #{tpu_custom_call.1} parent=1 // pred_check_branch
      %25 = sbr.rel (0) target = $region13
    $region12: #{tpu_custom_call.1} parent=1 // pred_region
      _
    $region13: #{tpu_custom_call.1} parent=1 // pred_fallthru
      _
    // Predicated region
    $region14: #{tpu_custom_call.1} parent=1 // pred_check
      _
    $region15: #{tpu_custom_call.1} parent=1 // pred_check_branch
      %27 = sbr.rel (0) target = $region17
    $region16: #{tpu_custom_call.1} parent=1 // pred_region
      %28 = dma.done [#allocation3], 256
    $region17: #{tpu_custom_call.1} parent=1 // pred_fallthru
      _
    %v29 = vld [vmem:[#allocation2] sm:$0xff]
    %v30 = vld [vmem:[#allocation2 + $0x8] sm:$0xff]
    %vm31 = vcmask 261120
    %v32 = vsel %vm31, %v29, 0.0
    %33 = vadd.xlane.f32.xlu0 %v32
    %v34 = vpop.xlane.xlu0 %33
    %v35 = vsel %vm31, %v30, 0.0
    %36 = vadd.xlane.f32.xlu0 %v35
    %v37 = vpop.xlane.xlu0 %36
    %v38 = vrcp.pop 32.0
    %v39 = vmul.f32 %v34, %v38
    %v40 = vmul.f32 %v37, %v38
    %v41 = vsub.f32 %v29, %v39
    %v42 = vsub.f32 %v30, %v40
    %v43 = vmul.f32 %v41, %v41
    %v44 = vmul.f32 %v42, %v42
    %v45 = vsel %vm31, %v43, 0.0
    %46 = vadd.xlane.f32.xlu0 %v45
    %v47 = vpop.xlane.xlu0 %46
    %v48 = vsel %vm31, %v44, 0.0
    %49 = vadd.xlane.f32.xlu0 %v48
    %v50 = vpop.xlane.xlu0 %49
    %v51 = vmul.f32 %v47, %v38
    %v52 = vmul.f32 %v50, %v38
    %v53 = vadd.f32 %v51, 1e-12
    %v54 = vadd.f32 %v52, 1e-12
    %v55 = vrsqrt.pop %v53
    %v56 = vrsqrt.pop %v54
    %v57 = vmul.f32 %v41, %v55
    %v58 = vmul.f32 %v42, %v56
    %v59 = vld [vmem:[%s1] sm:$0x1]
    %v61 = vlaneseq
    %v62 = vshrl.u32 %v61, 7
    %v63 = vsub.s32 0, %v62
    %v64 = vrot.slane %v59, %v63
    %v66 = vmul.f32 %v57, %v64
    %v67 = vmul.f32 %v58, %v64
    %v68 = vld [vmem:[%s2] sm:$0x1]
    %v70 = vlaneseq
    %v71 = vshrl.u32 %v70, 7
    %v72 = vsub.s32 0, %v71
    %v73 = vrot.slane %v68, %v72
    %v75 = vadd.f32 %v66, %v73
    %v76 = vadd.f32 %v67, %v73
    %v77 = vpack.c.bf16 %v76, %v75
    %v79 = vunpack.c.l.b16 %v77
    %v80 = vunpack.c.h.b16 %v77
    %v81 = vpack.c.b16 %v79, %v79
    %v82 = vpack.c.b16 %v80, %v80
    %vm85 = vcmask 257024
    %86 = vst.msk [vmem:[#allocation5] sm:$0xf] %vm85, %v81
    %87 = vst.msk [vmem:[#allocation5 + $0x4] sm:$0xf] %vm85, %v82
    // Predicated region
    $region18: #{tpu_custom_call.1} parent=1 // pred_check
      _
    $region19: #{tpu_custom_call.1} parent=1 // pred_check_branch
      %89 = sbr.rel (0) target = $region21
    $region20: #{tpu_custom_call.1} parent=1 // pred_region
      %s91 = ssub.s32 128, 128
      %92 = vsyncadd [#allocation4], %s91
      %s93 = sshll.u32 [#allocation5], 4
      %s94 = int_to_ptr.vmem [resolvable:$true] %s93
      %99 = dma.vmem_to_hbm [thread:$0]  %s94, 128, %s3, [#allocation4], 64, 64, 4
    $region21: #{tpu_custom_call.1} parent=1 // pred_fallthru
      _
    // Predicated region
    $region22: #{tpu_custom_call.1} parent=1 // pred_check
      _
    $region23: #{tpu_custom_call.1} parent=1 // pred_check_branch
      %101 = sbr.rel (0) target = $region25
    $region24: #{tpu_custom_call.1} parent=1 // pred_region
      %102 = dma.done [#allocation4], 128
    $region25: #{tpu_custom_call.1} parent=1 // pred_fallthru
      _
    %103 = vsyncpa [#allocation3], 1
    %104 = vsyncpa [#allocation4], 1

</llo_original>
